<compile_context>
chip_gen: v5e
topology: v5e:2x2
jax: 0.10.0
libtpu: 0.0.40
codegen_flags: <defaults>
</compile_context>

<pallas_src>
import numpy as np
import jax
import jax.numpy as jnp
from jax.experimental import pallas as pl
from jax.experimental.pallas import tpu as pltpu


_SQRT_HALF = float(1.0 / np.sqrt(2.0))
_MASK_NEG = -1e30                       # finite mask value -> no NaN in online softmax
_VMEM_LIMIT_CACHE = [None]


def _round_up(n, m):
    return ((n + m - 1) // m) * m


def _vmem_limit_bytes():
    """~100 MiB on v5e/v6e (128 MiB physical), ~51 MiB on v7x (64 MiB physical)."""
    if _VMEM_LIMIT_CACHE[0] is None:
        cap = 64 * 1024 * 1024
        try:
            cap = int(getattr(pltpu.get_tpu_info(), "vmem_capacity_bytes", cap))
        except Exception:
            pass
        _VMEM_LIMIT_CACHE[0] = int(min(cap * 0.8, 100 * 1024 * 1024))
    return _VMEM_LIMIT_CACHE[0]


def _cparams(*semantics):
    return pltpu.CompilerParams(dimension_semantics=semantics,
                                vmem_limit_bytes=_vmem_limit_bytes())


def _pick_tile(n, target, mult):
    """Largest divisor of n that is <= target and a multiple of `mult`; else n."""
    for d in range(min(n, target), 0, -1):
        if n % d == 0 and d % mult == 0:
            return d
    return n


# ----------------------------- in-kernel math helpers -----------------------------

def _erf(z):
    # Abramowitz & Stegun 7.1.26 polynomial (|err| < 1.5e-7).  The divide uses the
    # EUP approx reciprocal + one Newton step so it stays off the VALU.
    a1, a2, a3, a4, a5 = 0.254829592, -0.284496736, 1.421413741, -1.453152027, 1.061405429
    p = 0.3275911
    sign = jnp.where(z >= 0.0, 1.0, -1.0)
    az = jnp.abs(z)
    d = 1.0 + p * az
    t = pl.reciprocal(d, approx=True)
    t = t * (2.0 - d * t)                       # Newton step -> ~f32-exact
    poly = ((((a5 * t + a4) * t + a3) * t + a2) * t + a1) * t
    return sign * (1.0 - poly * jnp.exp(-az * az))


def _gelu(x):
    # F.gelu / nn.GELU default ("exact", erf-based)
    return 0.5 * x * (1.0 + _erf(x * _SQRT_HALF))


def _layernorm(x, g, b, eps=1e-5):
    mu = jnp.mean(x, axis=-1, keepdims=True)
    xc = x - mu
    var = jnp.mean(xc * xc, axis=-1, keepdims=True)
    return xc * jax.lax.rsqrt(var + eps) * g + b


# ----------------------------- Conv1d + GELU (+pos emb) -----------------------------

def _make_conv_kernel(t_tile, stride, add_pos):
    assert stride in (1, 2)

    def kernel(*refs):
        if add_pos:
            src_ref, w_ref, b_ref, pos_ref, o_ref = refs
        else:
            src_ref, w_ref, b_ref, o_ref = refs
        t0 = pl.multiple_of(pl.program_id(1) * t_tile, t_tile)
        if stride == 1:
            taps = [src_ref[0, pl.ds(t0 + k, t_tile), :] for k in range(3)]
        else:
            # in-kernel stride-2 de-interleave: one contiguous load, even/odd split
            rows = src_ref[0, pl.ds(2 * t0, 2 * t_tile + 2), :]
            r3 = rows.reshape(t_tile + 1, 2, rows.shape[-1])
            taps = [r3[:t_tile, 0, :], r3[:t_tile, 1, :], r3[1:, 0, :]]
        cols = jnp.concatenate(taps, axis=-1).astype(jnp.bfloat16)
        y = jnp.dot(cols, w_ref[...], preferred_element_type=jnp.float32) + b_ref[...]
        y = _gelu(y)
        if add_pos:
            y = y + pos_ref[...]
        o_ref[0] = y.astype(o_ref.dtype)

    return kernel


def _conv1d_gelu(src, w_flat, bias, t_out, t_tile, stride, out_dtype, pos=None):
    """Fused Conv1d(+bias)+GELU(+pos emb), output written directly in (B, T, C)."""
    B = src.shape[0]
    c_out = w_flat.shape[1]
    inputs = [src, w_flat, bias]
    # TODO(synk): at Whisper-large the full-T conv2 source slab should be T-tiled with
    # a halo block (and the weight single-buffered) to shrink VMEM residency further.
    in_specs = [pl.BlockSpec((1,) + src.shape[1:], lambda b, t: (b, 0, 0)),
                pl.BlockSpec(w_flat.shape, lambda b, t: (0, 0)),
                pl.BlockSpec(bias.shape, lambda b, t: (0, 0))]
    if pos is not None:
        inputs.append(pos)
        in_specs.append(pl.BlockSpec((t_tile, c_out), lambda b, t: (t, 0)))
    return pl.pallas_call(
        _make_conv_kernel(t_tile, stride, pos is not None),
        out_shape=jax.ShapeDtypeStruct((B, t_out, c_out), out_dtype),
        grid=(B, t_out // t_tile),
        in_specs=in_specs,
        out_specs=pl.BlockSpec((1, t_tile, c_out), lambda b, t: (b, t, 0)),
        compiler_params=_cparams("parallel", "parallel"),
    )(*inputs)


# ----------------------------- A) LN1 + fused QKV projection -----------------------------

def _make_qkv_kernel(n_head, d_head):
    scale = float(d_head) ** -0.5      # both D**-0.25 scales folded into q once
    c = n_head * d_head

    def kernel(x_ref, g_ref, b_ref, w_ref, bqkv_ref, q_ref, k_ref, v_ref):
        h = _layernorm(x_ref[0], g_ref[...], b_ref[...]).astype(jnp.bfloat16)
        qkv = jnp.dot(h, w_ref[...], preferred_element_type=jnp.float32) + bqkv_ref[...]
        q = qkv[:, :c] * scale
        k = qkv[:, c:2 * c]            # key bias section is zero
        v = qkv[:, 2 * c:]
        # TODO(synk): for d_head=64 these per-head (tr, 64) stores are half-masked;
        # head-pair packing into (tr, 128) slabs would make them lane-dense.
        for hh in range(n_head):
            sl = slice(hh * d_head, (hh + 1) * d_head)
            q_ref[0, hh] = q[:, sl].astype(q_ref.dtype)
            k_ref[0, hh] = k[:, sl].astype(k_ref.dtype)
            v_ref[0, hh] = v[:, sl].astype(v_ref.dtype)

    return kernel


def _qkv_projection(x, blk, n_head, row_tile):
    B, T, C = x.shape
    D = C // n_head
    tr = _pick_tile(T, row_tile, 8)
    row_spec = pl.BlockSpec((1, tr, C), lambda b, t: (b, t, 0))
    head_spec = pl.BlockSpec((1, n_head, tr, D), lambda b, t: (b, 0, t, 0))
    vec_spec = pl.BlockSpec((1, C), lambda b, t: (0, 0))
    out_sds = jax.ShapeDtypeStruct((B, n_head, T, D), jnp.bfloat16)
    return pl.pallas_call(
        _make_qkv_kernel(n_head, D),
        out_shape=(out_sds, out_sds, out_sds),
        grid=(B, T // tr),
        in_specs=[row_spec, vec_spec, vec_spec,
                  pl.BlockSpec((C, 3 * C), lambda b, t: (0, 0)),
                  pl.BlockSpec((1, 3 * C), lambda b, t: (0, 0))],
        out_specs=(head_spec, head_spec, head_spec),
        compiler_params=_cparams("parallel", "parallel"),
    )(x, blk["ln1_g"], blk["ln1_b"], blk["wqkv"], blk["bqkv"])


# ----------------------------- B) flash attention (all heads per step) -----------------------------

def _make_flash_kernel(kv_tile, t_valid, t_pad):
    need_mask = t_pad > t_valid

    def kernel(q_ref, k_ref, v_ref, o_ref, m_scr, l_scr, acc_scr):
        ki = pl.program_id(2)

        @pl.when(ki == 0)
        def _():
            m_scr[...] = jnp.full_like(m_scr, -jnp.inf)
            l_scr[...] = jnp.zeros_like(l_scr)
            acc_scr[...] = jnp.zeros_like(acc_scr)

        q = q_ref[0]                      # (H, Tq, D) bf16, already carries D**-0.5
        k = k_ref[0]                      # (H, Tk, D) bf16
        v = v_ref[0]
        s = jax.lax.dot_general(q, k, (((2,), (2,)), ((0,), (0,))),
                                preferred_element_type=jnp.float32)      # (H, Tq, Tk)
        if need_mask:
            col = ki * kv_tile + jax.lax.broadcasted_iota(jnp.int32, s.shape, 2)
            s = jnp.where(col < t_valid, s, _MASK_NEG)
        m_prev = m_scr[...]
        m_new = jnp.maximum(m_prev, jnp.max(s, axis=-1, keepdims=True))
        alpha = jnp.exp(m_prev - m_new)
        p = jnp.exp(s - m_new)
        l_scr[...] = alpha * l_scr[...] + jnp.sum(p, axis=-1, keepdims=True)
        acc_scr[...] = alpha * acc_scr[...] + jax.lax.dot_general(
            p.astype(jnp.bfloat16), v, (((2,), (1,)), ((0,), (0,))),
            preferred_element_type=jnp.float32)
        m_scr[...] = m_new

        @pl.when(ki == pl.num_programs(2) - 1)
        def _():
            o_ref[0] = (acc_scr[...] * pl.reciprocal(l_scr[...], approx=True)
                        ).astype(o_ref.dtype)

    return kernel


def _flash_attention(q, k, v, q_tile, kv_tile, t_valid):
    B, H, T, D = q.shape
    tq = _pick_tile(T, q_tile, 8)
    tk = _pick_tile(T, kv_tile, 8)
    q_spec = pl.BlockSpec((1, H, tq, D), lambda b, qi, ki: (b, 0, qi, 0))
    kv_spec = pl.BlockSpec((1, H, tk, D), lambda b, qi, ki: (b, 0, ki, 0))
    return pl.pallas_call(
        _make_flash_kernel(tk, t_valid, T),
        out_shape=jax.ShapeDtypeStruct((B, H, T, D), jnp.bfloat16),
        grid=(B, T // tq, T // tk),
        in_specs=[q_spec, kv_spec, kv_spec],
        out_specs=q_spec,
        scratch_shapes=[pltpu.VMEM((H, tq, 1), jnp.float32),
                        pltpu.VMEM((H, tq, 1), jnp.float32),
                        pltpu.VMEM((H, tq, D), jnp.float32)],
        compiler_params=_cparams("parallel", "parallel", "arbitrary"),
    )(q, k, v)


# ----------------- C+D) out-proj + residual + LN2 + MLP + residual (+fused ln_post) -----------------

def _make_block_out_kernel(n_head, apply_final_ln):
    def compute(a_ref, x_ref, wo_ref, bo_ref, g2_ref, b2_ref, w1_ref, b1_ref,
                w2_ref, bfc2_ref, gp_ref, bp_ref, o_ref, xp_scr, h_scr, acc_scr):
        fj = pl.program_id(2)

        @pl.when(fj == 0)
        def _():
            # out-projection + residual fused here: x' never round-trips HBM
            a = jnp.concatenate([a_ref[0, hh] for hh in range(n_head)], axis=-1)
            xp = (x_ref[0]
                  + jnp.dot(a, wo_ref[...], preferred_element_type=jnp.float32)
                  + bo_ref[...])
            xp_scr[...] = xp
            h_scr[...] = _layernorm(xp, g2_ref[...], b2_ref[...]).astype(h_scr.dtype)
            acc_scr[...] = jnp.zeros_like(acc_scr)

        f = _gelu(jnp.dot(h_scr[...], w1_ref[...],
                          preferred_element_type=jnp.float32) + b1_ref[...])
        acc_scr[...] += jnp.dot(f.astype(jnp.bfloat16), w2_ref[...],
                                preferred_element_type=jnp.float32)

        @pl.when(fj == pl.num_programs(2) - 1)
        def _():
            y = xp_scr[...] + acc_scr[...] + bfc2_ref[...]
            if apply_final_ln:
                y = _layernorm(y, gp_ref[...], bp_ref[...])
            o_ref[0] = y.astype(o_ref.dtype)

    if apply_final_ln:
        def kernel(a_ref, x_ref, wo_ref, bo_ref, g2_ref, b2_ref, w1_ref, b1_ref,
                   w2_ref, bfc2_ref, gp_ref, bp_ref, o_ref, xp_scr, h_scr, acc_scr):
            compute(a_ref, x_ref, wo_ref, bo_ref, g2_ref, b2_ref, w1_ref, b1_ref,
                    w2_ref, bfc2_ref, gp_ref, bp_ref, o_ref, xp_scr, h_scr, acc_scr)
    else:
        def kernel(a_ref, x_ref, wo_ref, bo_ref, g2_ref, b2_ref, w1_ref, b1_ref,
                   w2_ref, bfc2_ref, o_ref, xp_scr, h_scr, acc_scr):
            compute(a_ref, x_ref, wo_ref, bo_ref, g2_ref, b2_ref, w1_ref, b1_ref,
                    w2_ref, bfc2_ref, None, None, o_ref, xp_scr, h_scr, acc_scr)
    return kernel


def _block_out_mlp(attn, x, blk, n_head, row_tile, f_tile, final_ln):
    B, T, C = x.shape
    D = C // n_head
    n_ff = blk["w_fc1"].shape[1]
    tr = _pick_tile(T, row_tile, 8)
    tf = _pick_tile(n_ff, f_tile, 128)
    row_spec = pl.BlockSpec((1, tr, C), lambda b, t, f: (b, t, 0))
    vec_spec = pl.BlockSpec((1, C), lambda b, t, f: (0, 0))
    inputs = [attn, x, blk["wo"], blk["bo"], blk["ln2_g"], blk["ln2_b"],
              blk["w_fc1"], blk["b_fc1"], blk["w_fc2"], blk["b_fc2"]]
    in_specs = [pl.BlockSpec((1, n_head, tr, D), lambda b, t, f: (b, 0, t, 0)),
                row_spec,
                pl.BlockSpec((C, C), lambda b, t, f: (0, 0)),
                vec_spec, vec_spec, vec_spec,
                pl.BlockSpec((C, tf), lambda b, t, f: (0, f)),
                pl.BlockSpec((1, tf), lambda b, t, f: (0, f)),
                pl.BlockSpec((tf, C), lambda b, t, f: (f, 0)),
                vec_spec]
    if final_ln is not None:
        inputs += [final_ln[0], final_ln[1]]
        in_specs += [vec_spec, vec_spec]
    return pl.pallas_call(
        _make_block_out_kernel(n_head, final_ln is not None),
        out_shape=jax.ShapeDtypeStruct((B, T, C), jnp.float32),
        grid=(B, T // tr, n_ff // tf),
        in_specs=in_specs,
        out_specs=row_spec,
        scratch_shapes=[pltpu.VMEM((tr, C), jnp.float32),     # x' (post-attn residual)
                        pltpu.VMEM((tr, C), jnp.bfloat16),    # LN2 output (MXU input)
                        pltpu.VMEM((tr, C), jnp.float32)],    # MLP accumulator
        compiler_params=_cparams("parallel", "parallel", "arbitrary"),
    )(*inputs)


def residual_attention_block(x, blk, n_head, t_valid, *, row_tile=256, q_tile=512,
                             kv_tile=256, f_tile=512, final_ln=None):
    q, k, v = _qkv_projection(x, blk, n_head, row_tile)
    attn = _flash_attention(q, k, v, q_tile, kv_tile, t_valid)
    return _block_out_mlp(attn, x, blk, n_head, row_tile, f_tile, final_ln)


# ----------------------------- parameters / model glue -----------------------------

def sinusoids(length, channels, max_timescale=10000):
    assert channels % 2 == 0
    log_timescale_increment = np.log(max_timescale) / (channels // 2 - 1)
    inv_timescales = np.exp(-log_timescale_increment * np.arange(channels // 2))
    scaled_time = np.arange(length)[:, None] * inv_timescales[None, :]
    return jnp.asarray(np.concatenate([np.sin(scaled_time), np.cos(scaled_time)], axis=1),
                       jnp.float32)


def init_params(key, n_mels, n_ctx, n_state, n_head, n_layer):
    keys = iter(jax.random.split(key, 16 + 20 * n_layer))

    def rnd(shape, scale=0.05):
        return (scale * jax.random.normal(next(keys), shape)).astype(jnp.float32)

    # NOTE: all Linear weights are stored pre-transposed to (in, out) == torch_weight.T
    params = {
        "conv1_w": rnd((n_state, n_mels, 3)),
        "conv1_b": rnd((n_state,), 0.02),
        "conv2_w": rnd((n_state, n_state, 3)),
        "conv2_b": rnd((n_state,), 0.02),
        "pos": sinusoids(n_ctx, n_state),
        "lnp_g": jnp.ones((1, n_state), jnp.float32) + rnd((1, n_state), 0.02),
        "lnp_b": rnd((1, n_state), 0.02),
        "blocks": [],
    }
    for _ in range(n_layer):
        params["blocks"].append({
            "ln1_g": jnp.ones((1, n_state), jnp.float32) + rnd((1, n_state), 0.02),
            "ln1_b": rnd((1, n_state), 0.02),
            "wq": rnd((n_state, n_state)), "bq": rnd((1, n_state), 0.02),
            "wk": rnd((n_state, n_state)),                     # key: no bias
            "wv": rnd((n_state, n_state)), "bv": rnd((1, n_state), 0.02),
            "wo": rnd((n_state, n_state)), "bo": rnd((1, n_state), 0.02),
            "ln2_g": jnp.ones((1, n_state), jnp.float32) + rnd((1, n_state), 0.02),
            "ln2_b": rnd((1, n_state), 0.02),
            "w_fc1": rnd((n_state, 4 * n_state)), "b_fc1": rnd((1, 4 * n_state), 0.02),
            "w_fc2": rnd((4 * n_state, n_state)), "b_fc2": rnd((1, n_state), 0.02),
        })
    return params


def prepare_params(params):
    """Kernel-ready weights: flattened conv taps, fused QKV, bf16 matmul weights."""
    n_state, n_mels, _ = params["conv1_w"].shape
    cin_pad = _round_up(n_mels, 128)                      # lane-align conv1 taps
    w1 = jnp.transpose(params["conv1_w"], (2, 1, 0))      # (K, Cin, Cout)
    w1 = jnp.pad(w1, ((0, 0), (0, cin_pad - n_mels), (0, 0)))
    w2 = jnp.transpose(params["conv2_w"], (2, 1, 0))
    kp = {
        "cin_pad": cin_pad,
        "conv1_w": w1.reshape(3 * cin_pad, n_state).astype(jnp.bfloat16),
        "conv1_b": params["conv1_b"].reshape(1, n_state),
        "conv2_w": w2.reshape(3 * n_state, n_state).astype(jnp.bfloat16),
        "conv2_b": params["conv2_b"].reshape(1, n_state),
        "pos": params["pos"],
        "lnp_g": params["lnp_g"], "lnp_b": params["lnp_b"],
        "blocks": [],
    }
    for blk in params["blocks"]:
        kp["blocks"].append({
            "ln1_g": blk["ln1_g"], "ln1_b": blk["ln1_b"],
            "wqkv": jnp.concatenate([blk["wq"], blk["wk"], blk["wv"]],
                                    axis=1).astype(jnp.bfloat16),
            "bqkv": jnp.concatenate([blk["bq"], jnp.zeros_like(blk["bq"]), blk["bv"]],
                                    axis=1),
            "wo": blk["wo"].astype(jnp.bfloat16), "bo": blk["bo"],
            "ln2_g": blk["ln2_g"], "ln2_b": blk["ln2_b"],
            "w_fc1": blk["w_fc1"].astype(jnp.bfloat16), "b_fc1": blk["b_fc1"],
            "w_fc2": blk["w_fc2"].astype(jnp.bfloat16), "b_fc2": blk["b_fc2"],
        })
    return kp


def audio_encoder(x, kparams, n_head, *, row_tile=256, q_tile=512, kv_tile=256,
                  f_tile=512, conv_t_tile=256, seq_align=128):
    """x: (B, n_mels, T_in) float32 mel spectrogram -> (B, T_in//2 (+1), n_state)."""
    B, n_mels, t_in = x.shape
    cin_pad = kparams["cin_pad"]
    t1 = t_in
    t2 = (t1 - 1) // 2 + 1
    n_ctx = kparams["pos"].shape[0]
    assert t2 <= n_ctx, "audio too long"
    t_pad = _round_up(t2, seq_align)          # tile-friendly padded sequence length

    # ---- conv1 (stride 1): output directly in (B, T, C), stored bf16 ----
    x_t = jnp.pad(jnp.transpose(x, (0, 2, 1)),
                  ((0, 0), (1, 1), (0, cin_pad - n_mels)))
    tt1 = _pick_tile(t1, conv_t_tile, 8)
    h1 = _conv1d_gelu(x_t, kparams["conv1_w"], kparams["conv1_b"], t1, tt1,
                      stride=1, out_dtype=jnp.bfloat16)

    # ---- conv2 (stride 2): in-kernel even/odd de-interleave, pos-emb fused,
    #      written directly at the padded length t_pad ----
    hp = jnp.pad(h1, ((0, 0), (1, 2 * t_pad + 1 - t1), (0, 0)))
    pos = jnp.pad(kparams["pos"][:t2], ((0, t_pad - t2), (0, 0)))
    tt2 = _pick_tile(t_pad, conv_t_tile, 8)
    h = _conv1d_gelu(hp, kparams["conv2_w"], kparams["conv2_b"], t_pad, tt2,
                     stride=2, out_dtype=jnp.float32, pos=pos)

    # ---- transformer blocks; ln_post fused into the last block's epilogue ----
    blocks = kparams["blocks"]
    assert len(blocks) >= 1
    for li, blk in enumerate(blocks):
        fin = (kparams["lnp_g"], kparams["lnp_b"]) if li == len(blocks) - 1 else None
        h = residual_attention_block(h, blk, n_head, t2, row_tile=row_tile,
                                     q_tile=q_tile, kv_tile=kv_tile,
                                     f_tile=f_tile, final_ln=fin)
    return h[:, :t2, :]


# ----------------------------- pure-JAX reference (verification) -----------------------------

def encoder_ref(x, params, n_head):
    def conv1d(x, w, b, stride):
        y = jax.lax.conv_general_dilated(x, w, (stride,), [(1, 1)],
                                         dimension_numbers=("NCH", "OIH", "NCH"))
        return y + b[None, :, None]

    def ln(x, g, b, eps=1e-5):
        mu = x.mean(-1, keepdims=True)
        var = ((x - mu) ** 2).mean(-1, keepdims=True)
        return (x - mu) / jnp.sqrt(var + eps) * g + b

    gelu = lambda v: jax.nn.gelu(v, approximate=False)
    h = gelu(conv1d(x, params["conv1_w"], params["conv1_b"], 1))
    h = gelu(conv1d(h, params["conv2_w"], params["conv2_b"], 2))
    h = jnp.transpose(h, (0, 2, 1))
    B, T, C = h.shape
    h = h + params["pos"][:T]
    D = C // n_head
    scale = D ** (-0.25)
    for blk in params["blocks"]:
        hh = ln(h, blk["ln1_g"][0], blk["ln1_b"][0])
        q = hh @ blk["wq"] + blk["bq"][0]
        k = hh @ blk["wk"]
        v = hh @ blk["wv"] + blk["bv"][0]
        q = q.reshape(B, T, n_head, D).transpose(0, 2, 1, 3) * scale
        k = k.reshape(B, T, n_head, D).transpose(0, 2, 3, 1) * scale
        v = v.reshape(B, T, n_head, D).transpose(0, 2, 1, 3)
        w = jax.nn.softmax(q @ k, axis=-1)
        wv = (w @ v).transpose(0, 2, 1, 3).reshape(B, T, C)
        h = h + wv @ blk["wo"] + blk["bo"][0]
        hh = ln(h, blk["ln2_g"][0], blk["ln2_b"][0])
        h = h + gelu(hh @ blk["w_fc1"] + blk["b_fc1"][0]) @ blk["w_fc2"] + blk["b_fc2"][0]
    return ln(h, params["lnp_g"][0], params["lnp_b"][0])


# ----------------------------- main -----------------------------

if __name__ == "__main__":
    # TODO(synk): AudioEncoder.chunk/unchunk/inference are host-side Python windowing
    # utilities (not part of forward) and are intentionally not implemented as kernels.
    n_mels, n_state, n_head, n_layer = 8, 64, 4, 2
    batch, t_in = 2, 32
    n_ctx = (t_in - 1) // 2 + 1      # = 16, post-conv2 context length for pos embedding

    key = jax.random.PRNGKey(0)
    kp_, kx = jax.random.split(key)
    params = init_params(kp_, n_mels, n_ctx, n_state, n_head, n_layer)
    kparams = prepare_params(params)
    x = jax.random.normal(kx, (batch, n_mels, t_in), jnp.float32)

    # Small tiles so every grid axis (T tiles, flash Q/KV tiles, MLP F-reduction tiles)
    # has >1 step; seq_align=128 pads T=16 -> 128, exercising the KV masking path.
    out = jax.block_until_ready(
        audio_encoder(x, kparams, n_head, row_tile=8, q_tile=16, kv_tile=16,
                      f_tile=128, conv_t_tile=8, seq_align=128))
    assert out.shape == (batch, n_ctx, n_state), out.shape
    assert bool(jnp.all(jnp.isfinite(out)))

    ref = encoder_ref(x, params, n_head)
    # tolerance covers bf16 MXU inputs and the EUP approx reciprocals
    np.testing.assert_allclose(np.asarray(out), np.asarray(ref), rtol=5e-2, atol=5e-2)

    print("KERNEL_OK")
</pallas_src>

<mosaic_0001>
module attributes {stable_mosaic.version = 11 : i64} {
  func.func @kernel(%arg0: i32, %arg1: i32, %arg2: memref<1x34x128xf32, #tpu.memory_space<vmem>>, %arg3: memref<384x64xbf16, #tpu.memory_space<vmem>>, %arg4: memref<1x64xf32, #tpu.memory_space<vmem>>, %arg5: memref<1x8x64xbf16, #tpu.memory_space<vmem>>) attributes {dimension_semantics = [#tpu.dimension_semantics<parallel>, #tpu.dimension_semantics<parallel>], iteration_bounds = array<i64: 2, 4>, scalar_prefetch = 0 : i64, scratch_operands = 0 : i64, tpu.core_type = #tpu.core_type<tc>, window_params = [{transform_indices = @transform_0, window_bounds = array<i64: 1, 34, 128>}, {pipeline_mode = #tpu.pipeline_mode<synchronous>, transform_indices = @transform_1, window_bounds = array<i64: 384, 64>}, {pipeline_mode = #tpu.pipeline_mode<synchronous>, transform_indices = @transform_2, window_bounds = array<i64: 1, 64>}, {transform_indices = @transform_3, window_bounds = array<i64: 1, 8, 64>}]} {
    %c8_i32 = arith.constant 8 : i32
    %0 = arith.muli %arg1, %c8_i32 : i32
    %1 = tpu.assume_multiple %0, 8 : i32
    %c0_i32 = arith.constant 0 : i32
    %2 = arith.addi %1, %c0_i32 : i32
    %c0 = arith.constant 0 : index
    %3 = arith.index_cast %2 : i32 to index
    %c0_0 = arith.constant 0 : index
    %4 = vector.load %arg2[%c0, %3, %c0_0] : memref<1x34x128xf32, #tpu.memory_space<vmem>>, vector<1x8x128xf32>
    %5 = vector.shape_cast %4 : vector<1x8x128xf32> to vector<8x128xf32>
    %c1_i32 = arith.constant 1 : i32
    %6 = arith.addi %1, %c1_i32 : i32
    %c0_1 = arith.constant 0 : index
    %7 = arith.index_cast %6 : i32 to index
    %c0_2 = arith.constant 0 : index
    %8 = vector.load %arg2[%c0_1, %7, %c0_2] : memref<1x34x128xf32, #tpu.memory_space<vmem>>, vector<1x8x128xf32>
    %9 = vector.shape_cast %8 : vector<1x8x128xf32> to vector<8x128xf32>
    %c2_i32 = arith.constant 2 : i32
    %10 = arith.addi %1, %c2_i32 : i32
    %c0_3 = arith.constant 0 : index
    %11 = arith.index_cast %10 : i32 to index
    %c0_4 = arith.constant 0 : index
    %12 = vector.load %arg2[%c0_3, %11, %c0_4] : memref<1x34x128xf32, #tpu.memory_space<vmem>>, vector<1x8x128xf32>
    %13 = vector.shape_cast %12 : vector<1x8x128xf32> to vector<8x128xf32>
    %14 = tpu.concatenate %5, %9, %13 in 1 : vector<8x128xf32>, vector<8x128xf32>, vector<8x128xf32> -> vector<8x384xf32>
    %15 = arith.truncf %14 : vector<8x384xf32> to vector<8x384xbf16>
    %c0_5 = arith.constant 0 : index
    %c0_6 = arith.constant 0 : index
    %16 = vector.load %arg3[%c0_5, %c0_6] : memref<384x64xbf16, #tpu.memory_space<vmem>>, vector<384x64xbf16>
    %cst = arith.constant dense<0.000000e+00> : vector<8x64xf32>
    %17 = tpu.matmul %15, %16, %cst {dimension_numbers = #tpu.dot_dimension_numbers<[1], [0], [0], [1], [0, 0, 1, 1], [], []>} : vector<8x384xbf16>, vector<384x64xbf16>, vector<8x64xf32> -> vector<8x64xf32>
    %c0_7 = arith.constant 0 : index
    %c0_8 = arith.constant 0 : index
    %18 = vector.load %arg4[%c0_7, %c0_8] : memref<1x64xf32, #tpu.memory_space<vmem>>, vector<1x64xf32>
    %19 = vector.broadcast %18 : vector<1x64xf32> to vector<8x64xf32>
    %20 = arith.addf %17, %19 : vector<8x64xf32>
    %cst_9 = arith.constant 5.000000e-01 : f32
    %21 = vector.broadcast %cst_9 : f32 to vector<8x64xf32>
    %22 = arith.mulf %21, %20 : vector<8x64xf32>
    %cst_10 = arith.constant 0.707106769 : f32
    %23 = vector.broadcast %cst_10 : f32 to vector<8x64xf32>
    %24 = arith.mulf %20, %23 : vector<8x64xf32>
    %cst_11 = arith.constant 0.000000e+00 : f32
    %25 = vector.broadcast %cst_11 : f32 to vector<8x64xf32>
    %26 = arith.cmpf oge, %24, %25 : vector<8x64xf32>
    %cst_12 = arith.constant 1.000000e+00 : f32
    %cst_13 = arith.constant -1.000000e+00 : f32
    %27 = vector.broadcast %cst_12 : f32 to vector<8x64xf32>
    %28 = vector.broadcast %cst_13 : f32 to vector<8x64xf32>
    %29 = arith.select %26, %27, %28 : vector<8x64xi1>, vector<8x64xf32>
    %30 = math.absf %24 : vector<8x64xf32>
    %cst_14 = arith.constant 0.327591091 : f32
    %31 = vector.broadcast %cst_14 : f32 to vector<8x64xf32>
    %32 = arith.mulf %31, %30 : vector<8x64xf32>
    %cst_15 = arith.constant 1.000000e+00 : f32
    %33 = vector.broadcast %cst_15 : f32 to vector<8x64xf32>
    %34 = arith.addf %33, %32 : vector<8x64xf32>
    %35 = tpu.reciprocal %34 {approx = true} : vector<8x64xf32> -> vector<8x64xf32>
    %36 = arith.mulf %34, %35 : vector<8x64xf32>
    %cst_16 = arith.constant 2.000000e+00 : f32
    %37 = vector.broadcast %cst_16 : f32 to vector<8x64xf32>
    %38 = arith.subf %37, %36 : vector<8x64xf32>
    %39 = arith.mulf %35, %38 : vector<8x64xf32>
    %cst_17 = arith.constant 1.06140542 : f32
    %40 = vector.broadcast %cst_17 : f32 to vector<8x64xf32>
    %41 = arith.mulf %40, %39 : vector<8x64xf32>
    %cst_18 = arith.constant -1.45315206 : f32
    %42 = vector.broadcast %cst_18 : f32 to vector<8x64xf32>
    %43 = arith.addf %41, %42 : vector<8x64xf32>
    %44 = arith.mulf %43, %39 : vector<8x64xf32>
    %cst_19 = arith.constant 1.42141378 : f32
    %45 = vector.broadcast %cst_19 : f32 to vector<8x64xf32>
    %46 = arith.addf %44, %45 : vector<8x64xf32>
    %47 = arith.mulf %46, %39 : vector<8x64xf32>
    %cst_20 = arith.constant -0.284496725 : f32
    %48 = vector.broadcast %cst_20 : f32 to vector<8x64xf32>
    %49 = arith.addf %47, %48 : vector<8x64xf32>
    %50 = arith.mulf %49, %39 : vector<8x64xf32>
    %cst_21 = arith.constant 0.254829586 : f32
    %51 = vector.broadcast %cst_21 : f32 to vector<8x64xf32>
    %52 = arith.addf %50, %51 : vector<8x64xf32>
    %53 = arith.mulf %52, %39 : vector<8x64xf32>
    %cst_22 = arith.constant 0.000000e+00 : f32
    %54 = vector.broadcast %cst_22 : f32 to vector<8x64xf32>
    %55 = arith.subf %54, %30 : vector<8x64xf32>
    %56 = arith.mulf %55, %30 : vector<8x64xf32>
    %57 = math.exp %56 : vector<8x64xf32>
    %58 = arith.mulf %53, %57 : vector<8x64xf32>
    %cst_23 = arith.constant 1.000000e+00 : f32
    %59 = vector.broadcast %cst_23 : f32 to vector<8x64xf32>
    %60 = arith.subf %59, %58 : vector<8x64xf32>
    %61 = arith.mulf %29, %60 : vector<8x64xf32>
    %cst_24 = arith.constant 1.000000e+00 : f32
    %62 = vector.broadcast %cst_24 : f32 to vector<8x64xf32>
    %63 = arith.addf %62, %61 : vector<8x64xf32>
    %64 = arith.mulf %22, %63 : vector<8x64xf32>
    %65 = arith.truncf %64 : vector<8x64xf32> to vector<8x64xbf16>
    %c0_25 = arith.constant 0 : index
    %c0_26 = arith.constant 0 : index
    %c0_27 = arith.constant 0 : index
    %66 = vector.load %arg5[%c0_25, %c0_26, %c0_27] : memref<1x8x64xbf16, #tpu.memory_space<vmem>>, vector<1x8x64xbf16>
    %67 = vector.shape_cast %66 : vector<1x8x64xbf16> to vector<8x64xbf16>
    %68 = vector.shape_cast %65 : vector<8x64xbf16> to vector<1x8x64xbf16>
    tpu.vector_store %arg5[%c0_25, %c0_26, %c0_27], %68 {strides = array<i32>} : memref<1x8x64xbf16, #tpu.memory_space<vmem>>, vector<1x8x64xbf16>,
    return
  }
  func.func @transform_0(%arg0: i32, %arg1: i32) -> (i32, i32, i32) {
    %c0_i32 = arith.constant 0 : i32
    %c0_i32_0 = arith.constant 0 : i32
    %c0_i32_1 = arith.constant 0 : i32
    return %arg0, %c0_i32, %c0_i32_0 : i32, i32, i32
  }
  func.func @transform_1(%arg0: i32, %arg1: i32) -> (i32, i32) {
    %c0_i32 = arith.constant 0 : i32
    %c0_i32_0 = arith.constant 0 : i32
    %c0_i32_1 = arith.constant 0 : i32
    return %c0_i32, %c0_i32_0 : i32, i32
  }
  func.func @transform_2(%arg0: i32, %arg1: i32) -> (i32, i32) {
    %c0_i32 = arith.constant 0 : i32
    %c0_i32_0 = arith.constant 0 : i32
    %c0_i32_1 = arith.constant 0 : i32
    return %c0_i32, %c0_i32_0 : i32, i32
  }
  func.func @transform_3(%arg0: i32, %arg1: i32) -> (i32, i32, i32) {
    %c0_i32 = arith.constant 0 : i32
    %c0_i32_0 = arith.constant 0 : i32
    return %arg0, %arg1, %c0_i32 : i32, i32, i32
  }
}

</mosaic_0001>

<llo_original>
// kernel: tpu_custom_call.1
$region0: #{tpu_custom_call.1}
  #allocation0 [shape = 'u32[]', space=smem, size = 0x4, offset = 0x4, fixed_abs, tag = 'smem constant byte address 0x4 - core index']
  #allocation1 [shape = 'u32[72,128]{1,0:T(1,128)}', space=vmem, size = 0x9000, scoped, tag = 'internal scratch']
  %s0 = inlined_call_operand.vmem [shape: f32[2,34,128], index: 0, kind: input, shape index: {}]
  %s1 = inlined_call_operand.vmem [shape: bf16[384,64], index: 1, kind: input, shape index: {}]
  %s2 = inlined_call_operand.vmem [shape: f32[1,64], index: 2, kind: input, shape index: {}]
  %s3 = inlined_call_operand.hbm [shape: bf16[2,32,64], index: 3, kind: output, shape index: {}]
  %s4 = sld [smem:[#allocation0]]
  $region45: #{tpu_custom_call.1} parent=0
    _
  %s6 = ssub.s32 1, %s4
  %s7 = scalar_select 0, %s6, %s4
  $region1: #{tpu_custom_call.1} parent=0
    #allocation2 [shape = 'u8[4096]{0}', space=vmem, size = 0x1000, scoped, tag = 'output window, operand 0']
    #allocation3 [shape = 's32[2]{0}', space=sflag, size = 0x8, scoped, tag = 'scoped memory for tpu_custom_call.1']
    %8 = vsyncpa [#allocation3], 0
    %s9 = scalar_lea.sflag [#allocation3], 1
    %10 = vsyncpa %s9, 0
    loop: start=0, step=1, limit=10
    $region2: #{tpu_custom_call.1} parent=1 // loop_pre_header
      _
    $region3: #{tpu_custom_call.1} parent=1 // loop_header
      %s12 = sphi 0, %s16
      %p13 = scmp.ge.s32.totalorder %s12, 10
      %s19 = sphi 0, %s31
      %s20 = sphi 0, %s27
      %s21 = sphi 0, %s19
      %s22 = sphi 0, %s20
      %s23 = sphi 0, %s21
      %s24 = sphi 0, %s22
      %s34 = sphi 0, %s36
      %s37 = sphi 0, %s34
      %s38 = sphi 0, %s37
      %s54 = sphi 0, %s38
      %s58 = sphi 0, %s58
      %s60 = sphi 0, %s58
      %s61 = sphi 0, %s60
      %s75 = sphi 0, %s61
      %s79 = sphi 0, %s79
      %s81 = sphi 0, %s79
      %s82 = sphi 0, %s81
      %s96 = sphi 0, %s82
      %s104 = sphi 0, %s106
      %s107 = sphi 0, %s104
      %s108 = sphi 0, %s107
      %s124 = sphi 0, %s108
    $region4: #{tpu_custom_call.1} parent=1 // loop_header_branch
      %15 = sbr.rel (%p13) target = $region8
    $region5: #{tpu_custom_call.1} parent=1 // loop_body
      %s17 = ssub.s32 %s12, 1
      %s18 = ssub.s32 %s12, 2
      %s25 = sadd.s32 1, %s20
      %p26 = scmp.ge.s32.totalorder %s25, 4
      %s27 = scalar_select %p26, 0, %s25
      %s28 = sadd.s32 1, %s19
      %s29 = scalar_select %p26, %s28, %s19
      %p30 = scmp.ge.s32.totalorder %s29, 2
      %s31 = scalar_select %p30, 0, %s29
      %s32 = ssub.s32 %s19, %s31
      %p33 = scmp.eq.s32.totalorder %s32, 0
      %s35 = sadd.s32 %s34, 1
      %s36 = scalar_select %p33, %s34, %s35
      %p39 = pneg %p33
      %p40 = scmp.eq.s32.totalorder %s12, 7
      %p41 = por %p39, %p40
      %p42 = scmp.ne.s32.totalorder %s34, %s37
      %p43 = scmp.eq.s32.totalorder %s12, 0
      %p44 = por %p42, %p43
      %p45 = scmp.ne.s32.totalorder %s34, %s37
      %p46 = scmp.eq.s32.totalorder %s17, 7
      %p47 = por %p45, %p46
      %p48 = scmp.ne.s32.totalorder %s37, %s38
      %p49 = scmp.eq.s32.totalorder %s17, 0
      %p50 = por %p48, %p49
      %p51 = scmp.ne.s32.totalorder %s37, %s38
      %p52 = scmp.eq.s32.totalorder %s18, 7
      %p53 = por %p51, %p52
      %p55 = scmp.ne.s32.totalorder %s38, %s54
      %p56 = scmp.eq.s32.totalorder %s18, 0
      %p57 = por %p55, %p56
      %s59 = sadd.s32 %s58, 1
      %p62 = scmp.eq.s32.totalorder %s12, 7
      %p63 = scmp.ne.s32.totalorder %s58, %s60
      %p64 = scmp.eq.s32.totalorder %s12, 0
      %p65 = por %p63, %p64
      %p66 = scmp.ne.s32.totalorder %s58, %s60
      %p67 = scmp.eq.s32.totalorder %s17, 7
      %p68 = por %p66, %p67
      %p69 = scmp.ne.s32.totalorder %s60, %s61
      %p70 = scmp.eq.s32.totalorder %s17, 0
      %p71 = por %p69, %p70
      %p72 = scmp.ne.s32.totalorder %s60, %s61
      %p73 = scmp.eq.s32.totalorder %s18, 7
      %p74 = por %p72, %p73
      %p76 = scmp.ne.s32.totalorder %s61, %s75
      %p77 = scmp.eq.s32.totalorder %s18, 0
      %p78 = por %p76, %p77
      %s80 = sadd.s32 %s79, 1
      %p83 = scmp.eq.s32.totalorder %s12, 7
      %p84 = scmp.ne.s32.totalorder %s79, %s81
      %p85 = scmp.eq.s32.totalorder %s12, 0
      %p86 = por %p84, %p85
      %p87 = scmp.ne.s32.totalorder %s79, %s81
      %p88 = scmp.eq.s32.totalorder %s17, 7
      %p89 = por %p87, %p88
      %p90 = scmp.ne.s32.totalorder %s81, %s82
      %p91 = scmp.eq.s32.totalorder %s17, 0
      %p92 = por %p90, %p91
      %p93 = scmp.ne.s32.totalorder %s81, %s82
      %p94 = scmp.eq.s32.totalorder %s18, 7
      %p95 = por %p93, %p94
      %p97 = scmp.ne.s32.totalorder %s82, %s96
      %p98 = scmp.eq.s32.totalorder %s18, 0
      %p99 = por %p97, %p98
      %s100 = ssub.s32 %s19, %s31
      %s101 = ssub.s32 %s20, %s27
      %s102 = sor.u32 %s100, %s101
      %p103 = scmp.eq.s32.totalorder %s102, 0
      %s105 = sadd.s32 %s104, 1
      %s106 = scalar_select %p103, %s104, %s105
      %p109 = pneg %p103
      %p110 = scmp.eq.s32.totalorder %s12, 7
      %p111 = por %p109, %p110
      %p112 = scmp.ne.s32.totalorder %s104, %s107
      %p113 = scmp.eq.s32.totalorder %s12, 0
      %p114 = por %p112, %p113
      %p115 = scmp.ne.s32.totalorder %s104, %s107
      %p116 = scmp.eq.s32.totalorder %s17, 7
      %p117 = por %p115, %p116
      %p118 = scmp.ne.s32.totalorder %s107, %s108
      %p119 = scmp.eq.s32.totalorder %s17, 0
      %p120 = por %p118, %p119
      %p121 = scmp.ne.s32.totalorder %s107, %s108
      %p122 = scmp.eq.s32.totalorder %s18, 7
      %p123 = por %p121, %p122
      %p125 = scmp.ne.s32.totalorder %s108, %s124
      %p126 = scmp.eq.s32.totalorder %s18, 0
      %p127 = por %p125, %p126
      %p128 = scmp.le.s32.totalorder 1, %s12
      %p129 = scmp.lt.s32.totalorder %s12, 9
      %p130 = pnand %p128, %p129
      %p131 = pneg %p130
      // Predicated region
      $region9: #{tpu_custom_call.1} parent=5 // pred_check
        _
      $region10: #{tpu_custom_call.1} parent=5 // pred_check_branch
        %133 = sbr.rel (%p130) target = $region12
      $region11: #{tpu_custom_call.1} parent=5 // pred_region
        %s134 = ssub.s32 %s12, 1
        // Predicated region
        $region13: #{tpu_custom_call.1} parent=11 // pred_check
          %p135 = pneg %p71
        $region14: #{tpu_custom_call.1} parent=11 // pred_check_branch
          %137 = sbr.rel (%p135) target = $region16
        $region15: #{tpu_custom_call.1} parent=11 // pred_region
          _
        $region16: #{tpu_custom_call.1} parent=11 // pred_fallthru
          _
        // Predicated region
        $region17: #{tpu_custom_call.1} parent=11 // pred_check
          %p138 = pneg %p92
        $region18: #{tpu_custom_call.1} parent=11 // pred_check_branch
          %140 = sbr.rel (%p138) target = $region20
        $region19: #{tpu_custom_call.1} parent=11 // pred_region
          _
        $region20: #{tpu_custom_call.1} parent=11 // pred_fallthru
          _
      $region12: #{tpu_custom_call.1} parent=5 // pred_fallthru
        _
      %p141 = scmp.lt.s32.totalorder %s12, 8
      // Predicated region
      $region21: #{tpu_custom_call.1} parent=5 // pred_check
        %p142 = pneg %p141
      $region22: #{tpu_custom_call.1} parent=5 // pred_check_branch
        %144 = sbr.rel (%p142) target = $region24
      $region23: #{tpu_custom_call.1} parent=5 // pred_region
        // Predicated region
        $region25: #{tpu_custom_call.1} parent=23 // pred_check
          %p145 = pneg %p44
        $region26: #{tpu_custom_call.1} parent=23 // pred_check_branch
          %147 = sbr.rel (%p145) target = $region28
        $region27: #{tpu_custom_call.1} parent=23 // pred_region
          %p148 = scmp.lt.s32.totalorder %s19, 1
          %s149 = scalar_select %p148, %s19, 1
          %s150 = smul.addr %s149, 5
          %s151 = smul.addr %s150, 8
          %s152 = scalar_lea.vmem %s0, %s151
        $region28: #{tpu_custom_call.1} parent=23 // pred_fallthru
          _
      $region24: #{tpu_custom_call.1} parent=5 // pred_fallthru
        _
      %p153 = scmp.le.s32.totalorder 1, %s12
      %p154 = scmp.lt.s32.totalorder %s12, 9
      %p155 = pnand %p153, %p154
      %p156 = pneg %p155
      // Predicated region
      $region29: #{tpu_custom_call.1} parent=5 // pred_check
        _
      $region30: #{tpu_custom_call.1} parent=5 // pred_check_branch
        %158 = sbr.rel (%p155) target = $region32
      $region31: #{tpu_custom_call.1} parent=5 // pred_region
        %s159 = ssub.s32 %s12, 1
        %p160 = scmp.lt.s32.totalorder %s21, 1
        %s161 = scalar_select %p160, %s21, 1
        %s162 = smul.addr %s161, 5
        %s163 = smul.addr %s162, 8
        %s164 = scalar_lea.vmem %s0, %s163
        %p165 = pneg %p50
        %p166 = pneg %p47
        %p167 = pneg %p71
        %p168 = pneg %p68
        %p169 = pneg %p92
        %p170 = pneg %p89
        %p171 = pneg %p120
        %p172 = pneg %p117
        %s173 = sand.u32 %s107, 1
        %s174 = scalar_lea.sflag [#allocation3], %s173
        %s175 = sand.u32 %s107, 1
        %s176 = smul.addr %s175, 4
        %s177 = scalar_lea.vmem [#allocation2], %s176
        %p178 = scmp.lt.s32.totalorder %s21, 1
        %s179 = scalar_select %p178, %s21, 1
        %s180 = smul.addr %s179, 5
        %s181 = smul.addr %s180, 8
        %s182 = scalar_lea.vmem %s0, %s181
        %s183 = smul.u32 %s22, 8
        %s184 = scalar_lea.vmem %s182, %s183
        %v185 = vld [vmem:[%s184] sm:$0xff]
        %s186 = sadd.s32 %s183, 1
        %s187 = scalar_lea.vmem %s182, %s186
        %v188 = vld [vmem:[%s187] sm:$0xff]
        %s189 = sadd.s32 %s183, 2
        %s190 = scalar_lea.vmem %s182, %s189
        %v191 = vld [vmem:[%s190] sm:$0xff]
        %v192 = vpack.c.bf16 %v185, %v185
        %v193 = vpack.c.bf16 %v188, %v188
        %v194 = vpack.c.bf16 %v191, %v191
        %v195 = vld [vmem:[%s1] sm:$0xf]
        %v196 = vld [vmem:[%s1 + $0x4] sm:$0xf]
        %v197 = vld [vmem:[%s1 + $0x8] sm:$0xf]
        %v198 = vld [vmem:[%s1 + $0xc] sm:$0xf]
        %v199 = vld [vmem:[%s1 + $0x10] sm:$0xf]
        %v200 = vld [vmem:[%s1 + $0x14] sm:$0xf]
        %v201 = vld [vmem:[%s1 + $0x18] sm:$0xf]
        %v202 = vld [vmem:[%s1 + $0x1c] sm:$0xf]
        %v203 = vld [vmem:[%s1 + $0x20] sm:$0xf]
        %v204 = vld [vmem:[%s1 + $0x24] sm:$0xf]
        %v205 = vld [vmem:[%s1 + $0x28] sm:$0xf]
        %v206 = vld [vmem:[%s1 + $0x2c] sm:$0xf]
        %v207 = vld [vmem:[%s1 + $0x30] sm:$0xf]
        %v208 = vld [vmem:[%s1 + $0x34] sm:$0xf]
        %v209 = vld [vmem:[%s1 + $0x38] sm:$0xf]
        %v210 = vld [vmem:[%s1 + $0x3c] sm:$0xf]
        %v211 = vld [vmem:[%s1 + $0x40] sm:$0xf]
        %v212 = vld [vmem:[%s1 + $0x44] sm:$0xf]
        %v213 = vld [vmem:[%s1 + $0x48] sm:$0xf]
        %v214 = vld [vmem:[%s1 + $0x4c] sm:$0xf]
        %v215 = vld [vmem:[%s1 + $0x50] sm:$0xf]
        %v216 = vld [vmem:[%s1 + $0x54] sm:$0xf]
        %v217 = vld [vmem:[%s1 + $0x58] sm:$0xf]
        %v218 = vld [vmem:[%s1 + $0x5c] sm:$0xf]
        %v219 = vld [vmem:[%s1 + $0x60] sm:$0xf]
        %v220 = vld [vmem:[%s1 + $0x64] sm:$0xf]
        %v221 = vld [vmem:[%s1 + $0x68] sm:$0xf]
        %v222 = vld [vmem:[%s1 + $0x6c] sm:$0xf]
        %v223 = vld [vmem:[%s1 + $0x70] sm:$0xf]
        %v224 = vld [vmem:[%s1 + $0x74] sm:$0xf]
        %v225 = vld [vmem:[%s1 + $0x78] sm:$0xf]
        %v226 = vld [vmem:[%s1 + $0x7c] sm:$0xf]
        %v227 = vld [vmem:[%s1 + $0x80] sm:$0xf]
        %v228 = vld [vmem:[%s1 + $0x84] sm:$0xf]
        %v229 = vld [vmem:[%s1 + $0x88] sm:$0xf]
        %v230 = vld [vmem:[%s1 + $0x8c] sm:$0xf]
        %v231 = vld [vmem:[%s1 + $0x90] sm:$0xf]
        %v232 = vld [vmem:[%s1 + $0x94] sm:$0xf]
        %v233 = vld [vmem:[%s1 + $0x98] sm:$0xf]
        %v234 = vld [vmem:[%s1 + $0x9c] sm:$0xf]
        %v235 = vld [vmem:[%s1 + $0xa0] sm:$0xf]
        %v236 = vld [vmem:[%s1 + $0xa4] sm:$0xf]
        %v237 = vld [vmem:[%s1 + $0xa8] sm:$0xf]
        %v238 = vld [vmem:[%s1 + $0xac] sm:$0xf]
        %v239 = vld [vmem:[%s1 + $0xb0] sm:$0xf]
        %v240 = vld [vmem:[%s1 + $0xb4] sm:$0xf]
        %v241 = vld [vmem:[%s1 + $0xb8] sm:$0xf]
        %v242 = vld [vmem:[%s1 + $0xbc] sm:$0xf]
        %v243 = vld [vmem:[%s2] sm:$0x1]
        %v245 = vperm.slane %v243, 0
        %v295 = vunpack.c.l.b16 %v195
        %v296 = vunpack.c.l.b16 %v196
        %v297 = vunpack.c.l.b16 %v197
        %v298 = vunpack.c.l.b16 %v198
        %v299 = vunpack.c.l.b16 %v199
        %v300 = vunpack.c.l.b16 %v200
        %v301 = vunpack.c.l.b16 %v201
        %v302 = vunpack.c.l.b16 %v202
        %v303 = vunpack.c.l.b16 %v203
        %v304 = vunpack.c.l.b16 %v204
        %v305 = vunpack.c.l.b16 %v205
        %v306 = vunpack.c.l.b16 %v206
        %v307 = vunpack.c.l.b16 %v207
        %v308 = vunpack.c.l.b16 %v208
        %v309 = vunpack.c.l.b16 %v209
        %v310 = vunpack.c.l.b16 %v210
        %v311 = vunpack.c.l.b16 %v211
        %v312 = vunpack.c.l.b16 %v212
        %v313 = vunpack.c.l.b16 %v213
        %v314 = vunpack.c.l.b16 %v214
        %v315 = vunpack.c.l.b16 %v215
        %v316 = vunpack.c.l.b16 %v216
        %v317 = vunpack.c.l.b16 %v217
        %v318 = vunpack.c.l.b16 %v218
        %v319 = vunpack.c.l.b16 %v219
        %v320 = vunpack.c.l.b16 %v220
        %v321 = vunpack.c.l.b16 %v221
        %v322 = vunpack.c.l.b16 %v222
        %v323 = vunpack.c.l.b16 %v223
        %v324 = vunpack.c.l.b16 %v224
        %v325 = vunpack.c.l.b16 %v225
        %v326 = vunpack.c.l.b16 %v226
        %v327 = vunpack.c.l.b16 %v227
        %v328 = vunpack.c.l.b16 %v228
        %v329 = vunpack.c.l.b16 %v229
        %v330 = vunpack.c.l.b16 %v230
        %v331 = vunpack.c.l.b16 %v231
        %v332 = vunpack.c.l.b16 %v232
        %v333 = vunpack.c.l.b16 %v233
        %v334 = vunpack.c.l.b16 %v234
        %v335 = vunpack.c.l.b16 %v235
        %v336 = vunpack.c.l.b16 %v236
        %v337 = vunpack.c.l.b16 %v237
        %v338 = vunpack.c.l.b16 %v238
        %v339 = vunpack.c.l.b16 %v239
        %v340 = vunpack.c.l.b16 %v240
        %v341 = vunpack.c.l.b16 %v241
        %v342 = vunpack.c.l.b16 %v242
        %v343 = vpack.c.b16 %v296, %v295
        %v344 = vpack.c.b16 %v298, %v297
        %v345 = vpack.c.b16 %v300, %v299
        %v346 = vpack.c.b16 %v302, %v301
        %v347 = vpack.c.b16 %v304, %v303
        %v348 = vpack.c.b16 %v306, %v305
        %v349 = vpack.c.b16 %v308, %v307
        %v350 = vpack.c.b16 %v310, %v309
        %v351 = vpack.c.b16 %v312, %v311
        %v352 = vpack.c.b16 %v314, %v313
        %v353 = vpack.c.b16 %v316, %v315
        %v354 = vpack.c.b16 %v318, %v317
        %v355 = vpack.c.b16 %v320, %v319
        %v356 = vpack.c.b16 %v322, %v321
        %v357 = vpack.c.b16 %v324, %v323
        %v358 = vpack.c.b16 %v326, %v325
        %v359 = vpack.c.b16 %v328, %v327
        %v360 = vpack.c.b16 %v330, %v329
        %v361 = vpack.c.b16 %v332, %v331
        %v362 = vpack.c.b16 %v334, %v333
        %v363 = vpack.c.b16 %v336, %v335
        %v364 = vpack.c.b16 %v338, %v337
        %v365 = vpack.c.b16 %v340, %v339
        %v366 = vpack.c.b16 %v342, %v341
        %391 = vmatpush.bf16.msra.mxu0 %v350
        %392 = vmatpush.bf16.msra.mxu0 %v349
        %393 = vmatpush.bf16.msra.mxu0 %v348
        %394 = vmatpush.bf16.msra.mxu0 %v347
        %395 = vmatpush.bf16.msra.mxu0 %v346
        %396 = vmatpush.bf16.msra.mxu0 %v345
        %397 = vmatpush.bf16.msra.mxu0 %v344
        %398 = vmatpush.bf16.msra.mxu0 %v343
        %399 = vmatmul.bf16.gmra.mxu0 %v192
        %v400 = vpop.f32.mrf.mxu0
        %v401 = vadd.f32 %v245, %v400
        %v402 = vpop.f32.mrf.mxu0
        %403 = vdwg.mxu0
        %404 = vmatpush.bf16.msra.mxu0 %v358
        %405 = vmatpush.bf16.msra.mxu0 %v357
        %406 = vmatpush.bf16.msra.mxu0 %v356
        %407 = vmatpush.bf16.msra.mxu0 %v355
        %408 = vmatpush.bf16.msra.mxu0 %v354
        %409 = vmatpush.bf16.msra.mxu0 %v353
        %410 = vmatpush.bf16.msra.mxu0 %v352
        %411 = vmatpush.bf16.msra.mxu0 %v351
        %412 = vmatmul.bf16.gmra.mxu0 %v193
        %v413 = vpop.f32.mrf.mxu0
        %v414 = vadd.f32 %v401, %v413
        %v415 = vpop.f32.mrf.mxu0
        %416 = vdwg.mxu0
        %417 = vmatpush.bf16.msra.mxu0 %v366
        %418 = vmatpush.bf16.msra.mxu0 %v365
        %419 = vmatpush.bf16.msra.mxu0 %v364
        %420 = vmatpush.bf16.msra.mxu0 %v363
        %421 = vmatpush.bf16.msra.mxu0 %v362
        %422 = vmatpush.bf16.msra.mxu0 %v361
        %423 = vmatpush.bf16.msra.mxu0 %v360
        %424 = vmatpush.bf16.msra.mxu0 %v359
        %425 = vmatmul.bf16.gmra.mxu0 %v194
        %v426 = vpop.f32.mrf.mxu0
        %v427 = vadd.f32 %v414, %v426
        %v428 = vpop.f32.mrf.mxu0
        %429 = vdwg.mxu0
        %v430 = vmul.f32 %v427, 0.5
        %v431 = vmul.f32 %v427, 0.70710677
        %vm432 = vcmp.ge.f32.partialorder %v431, 0.0
        %v433 = vsel %vm432, 1.0, -1.0
        %v434 = vand.u32 2147483647, %v431
        %v435 = vmul.f32 %v434, 0.3275911
        %v436 = vadd.f32 %v435, 1.0
        %v437 = vrcp.pop %v436
        %v438 = vmul.f32 %v436, %v437
        %v439 = vsub.f32 2.0, %v438
        %v440 = vmul.f32 %v437, %v439
        %v441 = vmul.f32 %v440, 1.0614054
        %v442 = vadd.f32 %v441, -1.4531521
        %v443 = vmul.f32 %v442, %v440
        %v444 = vadd.f32 %v443, 1.4214138
        %v445 = vmul.f32 %v444, %v440
        %v446 = vadd.f32 %v445, -0.28449672
        %v447 = vmul.f32 %v446, %v440
        %v448 = vadd.f32 %v447, 0.2548296
        %v449 = vmul.f32 %v448, %v440
        %v450 = vsub.f32 0.0, %v434
        %v451 = vmul.f32 %v450, %v434
        %v452 = vmul.f32 %v451, 1.442695
        %v453 = vpow.pop %v452
        %v454 = vmul.f32 %v449, %v453
        %v455 = vsub.f32 1.0, %v454
        %v456 = vmul.f32 %v433, %v455
        %v457 = vadd.f32 %v456, 1.0
        %v458 = vmul.f32 %v430, %v457
        %v459 = vpack.c.bf16 %v458, %v458
        %vm460 = vcmask 519168
        %461 = vst.msk [vmem:[%s177] sm:$0xf] %vm460, %v459
        %s462 = sand.u32 %s107, 1
        %s463 = scalar_lea.sflag [#allocation3], %s462
        %s464 = sand.u32 %s107, 1
        %s465 = smul.addr %s464, 4
        %s466 = scalar_lea.vmem [#allocation2], %s465
        // Predicated region
        $region33: #{tpu_custom_call.1} parent=31 // pred_check
          %p467 = pneg %p117
        $region34: #{tpu_custom_call.1} parent=31 // pred_check_branch
          %469 = sbr.rel (%p467) target = $region36
        $region35: #{tpu_custom_call.1} parent=31 // pred_region
          %471 = vsyncadd %s463, 0
          %s472 = smul.addr %s21, 4
          %s473 = sadd.s32 %s22, %s472
          %s474 = smul.addr %s473, 4
          %s475 = scalar_lea.hbm %s3, %s474
          %s477 = sshll.u32 %s466, 4
          %s478 = int_to_ptr.vmem [resolvable:$true] %s477
          %s479 = sshll.u32 %s475, 4
          %s480 = int_to_ptr.hbm [resolvable:$true] %s479
          %482 = dma.vmem_to_hbm [thread:$0]  %s478, 64, %s480, %s463
        $region36: #{tpu_custom_call.1} parent=31 // pred_fallthru
          _
      $region32: #{tpu_custom_call.1} parent=5 // pred_fallthru
        _
      %p483 = scmp.le.s32.totalorder 2, %s12
      // Predicated region
      $region37: #{tpu_custom_call.1} parent=5 // pred_check
        %p484 = pneg %p483
      $region38: #{tpu_custom_call.1} parent=5 // pred_check_branch
        %486 = sbr.rel (%p484) target = $region40
      $region39: #{tpu_custom_call.1} parent=5 // pred_region
        %s487 = ssub.s32 %s12, 2
        // Predicated region
        $region41: #{tpu_custom_call.1} parent=39 // pred_check
          %p488 = pneg %p123
        $region42: #{tpu_custom_call.1} parent=39 // pred_check_branch
          %490 = sbr.rel (%p488) target = $region44
        $region43: #{tpu_custom_call.1} parent=39 // pred_region
          %s491 = sand.u32 %s108, 1
          %s492 = scalar_lea.sflag [#allocation3], %s491
          %s493 = sand.u32 %s108, 1
          %s494 = smul.addr %s493, 4
          %s495 = scalar_lea.vmem [#allocation2], %s494
          %497 = dma.done %s492, 64
        $region44: #{tpu_custom_call.1} parent=39 // pred_fallthru
          _
      $region40: #{tpu_custom_call.1} parent=5 // pred_fallthru
        _
    $region6: #{tpu_custom_call.1} parent=1 // loop_footer
      %s16 = sadd.s32 1, %s12
    $region7: #{tpu_custom_call.1} parent=1 // loop_footer_branch
      %11 = sbr.rel target = $region3
    $region8: #{tpu_custom_call.1} parent=1 // loop_exit
      _
    %498 = vsyncpa [#allocation3], 1
    %s499 = scalar_lea.sflag [#allocation3], 1
    %500 = vsyncpa %s499, 1

</llo_original>
